<compile_context>
chip_gen: v7x
topology: tpu7x:2x2x1
jax: 0.10.0
libtpu: 0.0.40
codegen_flags: <defaults>
</compile_context>

<pallas_src>
import jax
import jax.numpy as jnp
from jax.experimental import pallas as pl
from jax.experimental.pallas import tpu as pltpu


# ---------------------------------------------------------------------------
# Fused multi-step kernel: embedding one-hot gather + L LSTM cells + FC
# ---------------------------------------------------------------------------

def _decoder_seq_kernel(tok_ref,            # (1, N, 1) int32  per-step tokens
                        emb_ref,            # (V, E)    f32    embedding table
                        h0_ref, c0_ref,     # (L, N, H) f32    initial state
                        *refs):
    # refs = [w_ih_t_0, w_hh_t_0, b_0, ..., w_ih_t_{L-1}, w_hh_t_{L-1}, b_{L-1},
    #         fc_w_t, fc_b,  preds_out, h_out, c_out]
    num_layers = h0_ref.shape[0]
    layer_refs = refs[: 3 * num_layers]
    fcw_ref, fcb_ref, preds_ref, h_ref, c_ref = refs[3 * num_layers:]

    t = pl.program_id(0)
    _, N, H = h0_ref.shape
    V_in = emb_ref.shape[0]

    # h_ref / c_ref have constant index_maps -> VMEM-resident across the grid.
    # Seed them with the incoming state on the first step only.
    @pl.when(t == 0)
    def _():
        h_ref[...] = h0_ref[...]
        c_ref[...] = c0_ref[...]

    # --- vectorized, OOB-safe embedding gather: one MXU matmul -------------
    tok = tok_ref[0]                                           # (N, 1) int32
    one_hot = (jax.lax.broadcasted_iota(jnp.int32, (N, V_in), 1)
               == tok).astype(jnp.float32)                     # (N, V)
    layer_in = jnp.dot(one_hot, emb_ref[...],
                       preferred_element_type=jnp.float32)     # (N, E)

    # --- LSTM stack ---------------------------------------------------------
    for l in range(num_layers):
        w_ih_ref = layer_refs[3 * l]          # (In_l, 4H)
        w_hh_ref = layer_refs[3 * l + 1]      # (H,    4H)
        b_ref = layer_refs[3 * l + 2]         # (1,    4H)

        h_prev = h_ref[l]                     # (N, H)
        c_prev = c_ref[l]

        # Two MXU matmuls instead of a lane-dim concat of [x | h].
        gates = (jnp.dot(layer_in, w_ih_ref[...],
                         preferred_element_type=jnp.float32)
                 + jnp.dot(h_prev, w_hh_ref[...],
                           preferred_element_type=jnp.float32)
                 + b_ref[...])                # (N, 4H), PyTorch order [i,f,g,o]

        # One sigmoid over the whole 4H tile; tanh only on the g slice.
        sg = jax.nn.sigmoid(gates)
        i_g = sg[:, 0 * H:1 * H]
        f_g = sg[:, 1 * H:2 * H]
        o_g = sg[:, 3 * H:4 * H]
        g_g = jnp.tanh(gates[:, 2 * H:3 * H])

        c_new = f_g * c_prev + i_g * g_g
        h_new = o_g * jnp.tanh(c_new)

        h_ref[l] = h_new                      # in-VMEM state carry
        c_ref[l] = c_new
        layer_in = h_new

    # --- final projection: logits = h_top @ W_fc.T + b_fc -------------------
    logits = (jnp.dot(layer_in, fcw_ref[...],
                      preferred_element_type=jnp.float32)
              + fcb_ref[...])                 # (N, V_out)
    preds_ref[...] = logits[None, :, :]


# ---------------------------------------------------------------------------
# pallas_call wrappers
# ---------------------------------------------------------------------------

def _decoder_decode(tokens, hidden, cell, params):
    """Fused teacher-forced decode over a whole sequence.

    tokens: (T, N) int32 ; hidden/cell: (L, N, H) f32.
    Returns (preds (T, N, V), h_T, c_T)."""
    T, N = tokens.shape
    L, _, H = hidden.shape
    V_in, E = params["embedding"].shape
    V_out = params["fc_w_t"].shape[-1]

    tok_col = tokens.astype(jnp.int32).reshape(T, N, 1)

    # Constant index_maps => weights / embedding DMA'd once, VMEM-resident.
    in_specs = [
        pl.BlockSpec((1, N, 1), lambda t: (t, 0, 0)),        # per-step tokens
        pl.BlockSpec((V_in, E), lambda t: (0, 0)),           # embedding
        pl.BlockSpec((L, N, H), lambda t: (0, 0, 0)),        # h0
        pl.BlockSpec((L, N, H), lambda t: (0, 0, 0)),        # c0
    ]
    layer_args = []
    for l in range(L):
        w_ih = params["w_ih_t"][l]
        w_hh = params["w_hh_t"][l]
        b = params["bias"][l]
        layer_args += [w_ih, w_hh, b]
        in_specs += [pl.BlockSpec(w_ih.shape, lambda t: (0, 0)),
                     pl.BlockSpec(w_hh.shape, lambda t: (0, 0)),
                     pl.BlockSpec(b.shape, lambda t: (0, 0))]
    in_specs += [pl.BlockSpec(params["fc_w_t"].shape, lambda t: (0, 0)),
                 pl.BlockSpec(params["fc_b"].shape, lambda t: (0, 0))]

    out_specs = (
        pl.BlockSpec((1, N, V_out), lambda t: (t, 0, 0)),    # per-step logits
        pl.BlockSpec((L, N, H), lambda t: (0, 0, 0)),        # h carry / final
        pl.BlockSpec((L, N, H), lambda t: (0, 0, 0)),        # c carry / final
    )
    out_shape = (
        jax.ShapeDtypeStruct((T, N, V_out), jnp.float32),
        jax.ShapeDtypeStruct((L, N, H), jnp.float32),
        jax.ShapeDtypeStruct((L, N, H), jnp.float32),
    )

    preds_seq, h_new, c_new = pl.pallas_call(
        _decoder_seq_kernel,
        out_shape=out_shape,
        grid=(T,),
        in_specs=in_specs,
        out_specs=out_specs,
        compiler_params=pltpu.CompilerParams(
            dimension_semantics=("arbitrary",)),   # time is a carried loop
    )(tok_col, params["embedding"], hidden, cell,
      *layer_args, params["fc_w_t"], params["fc_b"])
    return preds_seq, h_new, c_new


decoder_decode = jax.jit(_decoder_decode)


def _decoder_forward(x_tokens, hidden, cell, params):
    """Exact mirror of Decoder.forward(x, hidden, cell): a single token step."""
    preds_seq, h_new, c_new = _decoder_decode(x_tokens[None, :], hidden, cell,
                                              params)
    return preds_seq[0], h_new, c_new


decoder_forward = jax.jit(_decoder_forward)


# ---------------------------------------------------------------------------
# Pure-JAX reference (f32, highest matmul precision)
# ---------------------------------------------------------------------------

def decoder_step_ref(tok, hidden, cell, params):
    hp = jax.lax.Precision.HIGHEST
    L, _N, H = hidden.shape
    layer_in = jnp.take(params["embedding"], tok, axis=0)
    new_h, new_c = [], []
    for l in range(L):
        gates = (jnp.dot(layer_in, params["w_ih_t"][l], precision=hp)
                 + jnp.dot(hidden[l], params["w_hh_t"][l], precision=hp)
                 + params["bias"][l])
        i_g = jax.nn.sigmoid(gates[:, 0 * H:1 * H])
        f_g = jax.nn.sigmoid(gates[:, 1 * H:2 * H])
        g_g = jnp.tanh(gates[:, 2 * H:3 * H])
        o_g = jax.nn.sigmoid(gates[:, 3 * H:4 * H])
        c_l = f_g * cell[l] + i_g * g_g
        h_l = o_g * jnp.tanh(c_l)
        new_h.append(h_l)
        new_c.append(c_l)
        layer_in = h_l
    preds = jnp.dot(layer_in, params["fc_w_t"], precision=hp) + params["fc_b"]
    return preds, jnp.stack(new_h), jnp.stack(new_c)


def decoder_decode_ref(tokens, hidden, cell, params):
    preds_all, h, c = [], hidden, cell
    for t in range(tokens.shape[0]):
        p, h, c = decoder_step_ref(tokens[t], h, c, params)
        preds_all.append(p)
    return jnp.stack(preds_all), h, c


# ---------------------------------------------------------------------------
# Main
# ---------------------------------------------------------------------------

if __name__ == "__main__":
    # Small shapes consistent with Decoder(input_size=vocab, embedding_size,
    # hidden_size, output_size=vocab, num_layers=2, p=0.1).
    vocab_size = 32
    embedding_size = 16
    hidden_size = 32
    num_layers = 2
    batch = 8
    seq_len = 6

    key = jax.random.PRNGKey(0)
    keys = jax.random.split(key, 12)

    def init(k, shape, scale=0.1):
        return (scale * jax.random.normal(k, shape)).astype(jnp.float32)

    params = {
        "embedding": init(keys[0], (vocab_size, embedding_size), scale=1.0),
        "w_ih_t": [init(keys[1], (embedding_size, 4 * hidden_size)),
                   init(keys[2], (hidden_size, 4 * hidden_size))],
        "w_hh_t": [init(keys[3], (hidden_size, 4 * hidden_size)),
                   init(keys[4], (hidden_size, 4 * hidden_size))],
        "bias": [init(keys[5], (1, 4 * hidden_size)),
                 init(keys[6], (1, 4 * hidden_size))],
        "fc_w_t": init(keys[7], (hidden_size, vocab_size)),
        "fc_b": init(keys[8], (1, vocab_size)),
    }

    tokens = jax.random.randint(keys[9], (seq_len, batch), 0, vocab_size,
                                dtype=jnp.int32)
    hidden0 = init(keys[10], (num_layers, batch, hidden_size), scale=1.0)
    cell0 = init(keys[11], (num_layers, batch, hidden_size), scale=1.0)

    # --- single-step call: exact Decoder.forward semantics ------------------
    preds1, h1, c1 = decoder_forward(tokens[0], hidden0, cell0, params)
    jax.block_until_ready((preds1, h1, c1))
    preds1_r, h1_r, c1_r = decoder_step_ref(tokens[0], hidden0, cell0, params)

    assert preds1.shape == (batch, vocab_size)
    assert h1.shape == (num_layers, batch, hidden_size)
    assert c1.shape == (num_layers, batch, hidden_size)
    assert jnp.allclose(preds1, preds1_r, atol=1e-4, rtol=1e-4), \
        float(jnp.max(jnp.abs(preds1 - preds1_r)))
    assert jnp.allclose(h1, h1_r, atol=1e-4, rtol=1e-4)
    assert jnp.allclose(c1, c1_r, atol=1e-4, rtol=1e-4)

    # --- fused multi-step decode: the time loop lives in-kernel -------------
    preds_seq, h_T, c_T = decoder_decode(tokens, hidden0, cell0, params)
    jax.block_until_ready((preds_seq, h_T, c_T))
    preds_seq_r, h_T_r, c_T_r = decoder_decode_ref(tokens, hidden0, cell0,
                                                   params)

    assert preds_seq.shape == (seq_len, batch, vocab_size)
    assert jnp.allclose(preds_seq, preds_seq_r, atol=1e-4, rtol=1e-4), \
        float(jnp.max(jnp.abs(preds_seq - preds_seq_r)))
    assert jnp.allclose(h_T, h_T_r, atol=1e-4, rtol=1e-4)
    assert jnp.allclose(c_T, c_T_r, atol=1e-4, rtol=1e-4)

    print("KERNEL_OK")
</pallas_src>

<mosaic_0001>
module attributes {stable_mosaic.version = 11 : i64} {
  func.func @_decoder_seq_kernel(%arg0: i32, %arg1: memref<1x8x1xi32, #tpu.memory_space<vmem>>, %arg2: memref<32x16xf32, #tpu.memory_space<vmem>>, %arg3: memref<2x8x32xf32, #tpu.memory_space<vmem>>, %arg4: memref<2x8x32xf32, #tpu.memory_space<vmem>>, %arg5: memref<16x128xf32, #tpu.memory_space<vmem>>, %arg6: memref<32x128xf32, #tpu.memory_space<vmem>>, %arg7: memref<1x128xf32, #tpu.memory_space<vmem>>, %arg8: memref<32x128xf32, #tpu.memory_space<vmem>>, %arg9: memref<32x128xf32, #tpu.memory_space<vmem>>, %arg10: memref<1x128xf32, #tpu.memory_space<vmem>>, %arg11: memref<32x32xf32, #tpu.memory_space<vmem>>, %arg12: memref<1x32xf32, #tpu.memory_space<vmem>>, %arg13: memref<1x8x32xf32, #tpu.memory_space<vmem>>, %arg14: memref<2x8x32xf32, #tpu.memory_space<vmem>>, %arg15: memref<2x8x32xf32, #tpu.memory_space<vmem>>) attributes {dimension_semantics = [#tpu.dimension_semantics<arbitrary>], iteration_bounds = array<i64: 1>, scalar_prefetch = 0 : i64, scratch_operands = 0 : i64, tpu.core_type = #tpu.core_type<tc>, window_params = [{transform_indices = @transform_0, window_bounds = array<i64: 1, 8, 1>}, {pipeline_mode = #tpu.pipeline_mode<synchronous>, transform_indices = @transform_1, window_bounds = array<i64: 32, 16>}, {pipeline_mode = #tpu.pipeline_mode<synchronous>, transform_indices = @transform_2, window_bounds = array<i64: 2, 8, 32>}, {pipeline_mode = #tpu.pipeline_mode<synchronous>, transform_indices = @transform_3, window_bounds = array<i64: 2, 8, 32>}, {pipeline_mode = #tpu.pipeline_mode<synchronous>, transform_indices = @transform_4, window_bounds = array<i64: 16, 128>}, {pipeline_mode = #tpu.pipeline_mode<synchronous>, transform_indices = @transform_5, window_bounds = array<i64: 32, 128>}, {pipeline_mode = #tpu.pipeline_mode<synchronous>, transform_indices = @transform_6, window_bounds = array<i64: 1, 128>}, {pipeline_mode = #tpu.pipeline_mode<synchronous>, transform_indices = @transform_7, window_bounds = array<i64: 32, 128>}, {pipeline_mode = #tpu.pipeline_mode<synchronous>, transform_indices = @transform_8, window_bounds = array<i64: 32, 128>}, {pipeline_mode = #tpu.pipeline_mode<synchronous>, transform_indices = @transform_9, window_bounds = array<i64: 1, 128>}, {pipeline_mode = #tpu.pipeline_mode<synchronous>, transform_indices = @transform_10, window_bounds = array<i64: 32, 32>}, {pipeline_mode = #tpu.pipeline_mode<synchronous>, transform_indices = @transform_11, window_bounds = array<i64: 1, 32>}, {transform_indices = @transform_12, window_bounds = array<i64: 1, 8, 32>}, {pipeline_mode = #tpu.pipeline_mode<synchronous>, transform_indices = @transform_13, window_bounds = array<i64: 2, 8, 32>}, {pipeline_mode = #tpu.pipeline_mode<synchronous>, transform_indices = @transform_14, window_bounds = array<i64: 2, 8, 32>}]} {
    %c0_i32 = arith.constant 0 : i32
    %0 = arith.cmpi eq, %arg0, %c0_i32 : i32
    %1 = arith.extui %0 : i1 to i32
    %c0_i32_0 = arith.constant 0 : i32
    %2 = arith.cmpi ne, %1, %c0_i32_0 : i32
    scf.if %2 {
      %c0_54 = arith.constant 0 : index
      %c0_55 = arith.constant 0 : index
      %c0_56 = arith.constant 0 : index
      %85 = vector.load %arg3[%c0_54, %c0_55, %c0_56] : memref<2x8x32xf32, #tpu.memory_space<vmem>>, vector<2x8x32xf32>
      %c0_57 = arith.constant 0 : index
      %c0_58 = arith.constant 0 : index
      %c0_59 = arith.constant 0 : index
      %86 = vector.load %arg14[%c0_57, %c0_58, %c0_59] : memref<2x8x32xf32, #tpu.memory_space<vmem>>, vector<2x8x32xf32>
      tpu.vector_store %arg14[%c0_57, %c0_58, %c0_59], %85 {strides = array<i32>} : memref<2x8x32xf32, #tpu.memory_space<vmem>>, vector<2x8x32xf32>,
      %c0_60 = arith.constant 0 : index
      %c0_61 = arith.constant 0 : index
      %c0_62 = arith.constant 0 : index
      %87 = vector.load %arg4[%c0_60, %c0_61, %c0_62] : memref<2x8x32xf32, #tpu.memory_space<vmem>>, vector<2x8x32xf32>
      %c0_63 = arith.constant 0 : index
      %c0_64 = arith.constant 0 : index
      %c0_65 = arith.constant 0 : index
      %88 = vector.load %arg15[%c0_63, %c0_64, %c0_65] : memref<2x8x32xf32, #tpu.memory_space<vmem>>, vector<2x8x32xf32>
      tpu.vector_store %arg15[%c0_63, %c0_64, %c0_65], %87 {strides = array<i32>} : memref<2x8x32xf32, #tpu.memory_space<vmem>>, vector<2x8x32xf32>,
    } else {
    }
    %c0 = arith.constant 0 : index
    %c0_1 = arith.constant 0 : index
    %c0_2 = arith.constant 0 : index
    %3 = vector.load %arg1[%c0, %c0_1, %c0_2] : memref<1x8x1xi32, #tpu.memory_space<vmem>>, vector<1x8x1xi32>
    %4 = vector.shape_cast %3 : vector<1x8x1xi32> to vector<8x1xi32>
    %5 = tpu.iota {dimensions = array<i32: 1>} : vector<8x32xi32>
    %6 = vector.broadcast %4 : vector<8x1xi32> to vector<8x32xi32>
    %7 = arith.cmpi eq, %5, %6 : vector<8x32xi32>
    %8 = arith.extui %7 : vector<8x32xi1> to vector<8x32xi32>
    %9 = arith.sitofp %8 : vector<8x32xi32> to vector<8x32xf32>
    %c0_3 = arith.constant 0 : index
    %c0_4 = arith.constant 0 : index
    %10 = vector.load %arg2[%c0_3, %c0_4] : memref<32x16xf32, #tpu.memory_space<vmem>>, vector<32x16xf32>
    %cst = arith.constant dense<0.000000e+00> : vector<8x16xf32>
    %11 = tpu.matmul %9, %10, %cst {dimension_numbers = #tpu.dot_dimension_numbers<[1], [0], [0], [1], [0, 0, 1, 1], [], []>} : vector<8x32xf32>, vector<32x16xf32>, vector<8x16xf32> -> vector<8x16xf32>
    %c0_5 = arith.constant 0 : index
    %c0_6 = arith.constant 0 : index
    %c0_7 = arith.constant 0 : index
    %12 = vector.load %arg14[%c0_5, %c0_6, %c0_7] : memref<2x8x32xf32, #tpu.memory_space<vmem>>, vector<1x8x32xf32>
    %13 = vector.shape_cast %12 : vector<1x8x32xf32> to vector<8x32xf32>
    %c0_8 = arith.constant 0 : index
    %c0_9 = arith.constant 0 : index
    %c0_10 = arith.constant 0 : index
    %14 = vector.load %arg15[%c0_8, %c0_9, %c0_10] : memref<2x8x32xf32, #tpu.memory_space<vmem>>, vector<1x8x32xf32>
    %15 = vector.shape_cast %14 : vector<1x8x32xf32> to vector<8x32xf32>
    %c0_11 = arith.constant 0 : index
    %c0_12 = arith.constant 0 : index
    %16 = vector.load %arg5[%c0_11, %c0_12] : memref<16x128xf32, #tpu.memory_space<vmem>>, vector<16x128xf32>
    %cst_13 = arith.constant dense<0.000000e+00> : vector<8x128xf32>
    %17 = tpu.matmul %11, %16, %cst_13 {dimension_numbers = #tpu.dot_dimension_numbers<[1], [0], [0], [1], [0, 0, 1, 1], [], []>} : vector<8x16xf32>, vector<16x128xf32>, vector<8x128xf32> -> vector<8x128xf32>
    %c0_14 = arith.constant 0 : index
    %c0_15 = arith.constant 0 : index
    %18 = vector.load %arg6[%c0_14, %c0_15] : memref<32x128xf32, #tpu.memory_space<vmem>>, vector<32x128xf32>
    %cst_16 = arith.constant dense<0.000000e+00> : vector<8x128xf32>
    %19 = tpu.matmul %13, %18, %cst_16 {dimension_numbers = #tpu.dot_dimension_numbers<[1], [0], [0], [1], [0, 0, 1, 1], [], []>} : vector<8x32xf32>, vector<32x128xf32>, vector<8x128xf32> -> vector<8x128xf32>
    %20 = arith.addf %17, %19 : vector<8x128xf32>
    %c0_17 = arith.constant 0 : index
    %c0_18 = arith.constant 0 : index
    %21 = vector.load %arg7[%c0_17, %c0_18] : memref<1x128xf32, #tpu.memory_space<vmem>>, vector<1x128xf32>
    %22 = vector.broadcast %21 : vector<1x128xf32> to vector<8x128xf32>
    %23 = arith.addf %20, %22 : vector<8x128xf32>
    %24 = arith.negf %23 : vector<8x128xf32>
    %25 = math.exp %24 : vector<8x128xf32>
    %cst_19 = arith.constant 1.000000e+00 : f32
    %26 = vector.broadcast %cst_19 : f32 to vector<8x128xf32>
    %27 = arith.addf %26, %25 : vector<8x128xf32>
    %28 = arith.divf %26, %27 : vector<8x128xf32>
    %29 = vector.extract_strided_slice %28 {offsets = [0, 0], sizes = [8, 32], strides = [1, 1]} : vector<8x128xf32> to vector<8x32xf32>
    %30 = vector.extract_strided_slice %28 {offsets = [0, 32], sizes = [8, 32], strides = [1, 1]} : vector<8x128xf32> to vector<8x32xf32>
    %31 = vector.extract_strided_slice %28 {offsets = [0, 96], sizes = [8, 32], strides = [1, 1]} : vector<8x128xf32> to vector<8x32xf32>
    %32 = vector.extract_strided_slice %23 {offsets = [0, 64], sizes = [8, 32], strides = [1, 1]} : vector<8x128xf32> to vector<8x32xf32>
    %33 = math.tanh %32 : vector<8x32xf32>
    %34 = arith.mulf %30, %15 : vector<8x32xf32>
    %35 = arith.mulf %29, %33 : vector<8x32xf32>
    %36 = arith.addf %34, %35 : vector<8x32xf32>
    %37 = math.tanh %36 : vector<8x32xf32>
    %38 = arith.mulf %31, %37 : vector<8x32xf32>
    %c0_20 = arith.constant 0 : index
    %c0_21 = arith.constant 0 : index
    %c0_22 = arith.constant 0 : index
    %39 = vector.load %arg14[%c0_20, %c0_21, %c0_22] : memref<2x8x32xf32, #tpu.memory_space<vmem>>, vector<1x8x32xf32>
    %40 = vector.shape_cast %39 : vector<1x8x32xf32> to vector<8x32xf32>
    %41 = vector.shape_cast %38 : vector<8x32xf32> to vector<1x8x32xf32>
    tpu.vector_store %arg14[%c0_20, %c0_21, %c0_22], %41 {strides = array<i32>} : memref<2x8x32xf32, #tpu.memory_space<vmem>>, vector<1x8x32xf32>,
    %c0_23 = arith.constant 0 : index
    %c0_24 = arith.constant 0 : index
    %c0_25 = arith.constant 0 : index
    %42 = vector.load %arg15[%c0_23, %c0_24, %c0_25] : memref<2x8x32xf32, #tpu.memory_space<vmem>>, vector<1x8x32xf32>
    %43 = vector.shape_cast %42 : vector<1x8x32xf32> to vector<8x32xf32>
    %44 = vector.shape_cast %36 : vector<8x32xf32> to vector<1x8x32xf32>
    tpu.vector_store %arg15[%c0_23, %c0_24, %c0_25], %44 {strides = array<i32>} : memref<2x8x32xf32, #tpu.memory_space<vmem>>, vector<1x8x32xf32>,
    %c1 = arith.constant 1 : index
    %c0_26 = arith.constant 0 : index
    %c0_27 = arith.constant 0 : index
    %45 = vector.load %arg14[%c1, %c0_26, %c0_27] : memref<2x8x32xf32, #tpu.memory_space<vmem>>, vector<1x8x32xf32>
    %46 = vector.shape_cast %45 : vector<1x8x32xf32> to vector<8x32xf32>
    %c1_28 = arith.constant 1 : index
    %c0_29 = arith.constant 0 : index
    %c0_30 = arith.constant 0 : index
    %47 = vector.load %arg15[%c1_28, %c0_29, %c0_30] : memref<2x8x32xf32, #tpu.memory_space<vmem>>, vector<1x8x32xf32>
    %48 = vector.shape_cast %47 : vector<1x8x32xf32> to vector<8x32xf32>
    %c0_31 = arith.constant 0 : index
    %c0_32 = arith.constant 0 : index
    %49 = vector.load %arg8[%c0_31, %c0_32] : memref<32x128xf32, #tpu.memory_space<vmem>>, vector<32x128xf32>
    %cst_33 = arith.constant dense<0.000000e+00> : vector<8x128xf32>
    %50 = tpu.matmul %38, %49, %cst_33 {dimension_numbers = #tpu.dot_dimension_numbers<[1], [0], [0], [1], [0, 0, 1, 1], [], []>} : vector<8x32xf32>, vector<32x128xf32>, vector<8x128xf32> -> vector<8x128xf32>
    %c0_34 = arith.constant 0 : index
    %c0_35 = arith.constant 0 : index
    %51 = vector.load %arg9[%c0_34, %c0_35] : memref<32x128xf32, #tpu.memory_space<vmem>>, vector<32x128xf32>
    %cst_36 = arith.constant dense<0.000000e+00> : vector<8x128xf32>
    %52 = tpu.matmul %46, %51, %cst_36 {dimension_numbers = #tpu.dot_dimension_numbers<[1], [0], [0], [1], [0, 0, 1, 1], [], []>} : vector<8x32xf32>, vector<32x128xf32>, vector<8x128xf32> -> vector<8x128xf32>
    %53 = arith.addf %50, %52 : vector<8x128xf32>
    %c0_37 = arith.constant 0 : index
    %c0_38 = arith.constant 0 : index
    %54 = vector.load %arg10[%c0_37, %c0_38] : memref<1x128xf32, #tpu.memory_space<vmem>>, vector<1x128xf32>
    %55 = vector.broadcast %54 : vector<1x128xf32> to vector<8x128xf32>
    %56 = arith.addf %53, %55 : vector<8x128xf32>
    %57 = arith.negf %56 : vector<8x128xf32>
    %58 = math.exp %57 : vector<8x128xf32>
    %cst_39 = arith.constant 1.000000e+00 : f32
    %59 = vector.broadcast %cst_39 : f32 to vector<8x128xf32>
    %60 = arith.addf %59, %58 : vector<8x128xf32>
    %61 = arith.divf %59, %60 : vector<8x128xf32>
    %62 = vector.extract_strided_slice %61 {offsets = [0, 0], sizes = [8, 32], strides = [1, 1]} : vector<8x128xf32> to vector<8x32xf32>
    %63 = vector.extract_strided_slice %61 {offsets = [0, 32], sizes = [8, 32], strides = [1, 1]} : vector<8x128xf32> to vector<8x32xf32>
    %64 = vector.extract_strided_slice %61 {offsets = [0, 96], sizes = [8, 32], strides = [1, 1]} : vector<8x128xf32> to vector<8x32xf32>
    %65 = vector.extract_strided_slice %56 {offsets = [0, 64], sizes = [8, 32], strides = [1, 1]} : vector<8x128xf32> to vector<8x32xf32>
    %66 = math.tanh %65 : vector<8x32xf32>
    %67 = arith.mulf %63, %48 : vector<8x32xf32>
    %68 = arith.mulf %62, %66 : vector<8x32xf32>
    %69 = arith.addf %67, %68 : vector<8x32xf32>
    %70 = math.tanh %69 : vector<8x32xf32>
    %71 = arith.mulf %64, %70 : vector<8x32xf32>
    %c1_40 = arith.constant 1 : index
    %c0_41 = arith.constant 0 : index
    %c0_42 = arith.constant 0 : index
    %72 = vector.load %arg14[%c1_40, %c0_41, %c0_42] : memref<2x8x32xf32, #tpu.memory_space<vmem>>, vector<1x8x32xf32>
    %73 = vector.shape_cast %72 : vector<1x8x32xf32> to vector<8x32xf32>
    %74 = vector.shape_cast %71 : vector<8x32xf32> to vector<1x8x32xf32>
    tpu.vector_store %arg14[%c1_40, %c0_41, %c0_42], %74 {strides = array<i32>} : memref<2x8x32xf32, #tpu.memory_space<vmem>>, vector<1x8x32xf32>,
    %c1_43 = arith.constant 1 : index
    %c0_44 = arith.constant 0 : index
    %c0_45 = arith.constant 0 : index
    %75 = vector.load %arg15[%c1_43, %c0_44, %c0_45] : memref<2x8x32xf32, #tpu.memory_space<vmem>>, vector<1x8x32xf32>
    %76 = vector.shape_cast %75 : vector<1x8x32xf32> to vector<8x32xf32>
    %77 = vector.shape_cast %69 : vector<8x32xf32> to vector<1x8x32xf32>
    tpu.vector_store %arg15[%c1_43, %c0_44, %c0_45], %77 {strides = array<i32>} : memref<2x8x32xf32, #tpu.memory_space<vmem>>, vector<1x8x32xf32>,
    %c0_46 = arith.constant 0 : index
    %c0_47 = arith.constant 0 : index
    %78 = vector.load %arg11[%c0_46, %c0_47] : memref<32x32xf32, #tpu.memory_space<vmem>>, vector<32x32xf32>
    %cst_48 = arith.constant dense<0.000000e+00> : vector<8x32xf32>
    %79 = tpu.matmul %71, %78, %cst_48 {dimension_numbers = #tpu.dot_dimension_numbers<[1], [0], [0], [1], [0, 0, 1, 1], [], []>} : vector<8x32xf32>, vector<32x32xf32>, vector<8x32xf32> -> vector<8x32xf32>
    %c0_49 = arith.constant 0 : index
    %c0_50 = arith.constant 0 : index
    %80 = vector.load %arg12[%c0_49, %c0_50] : memref<1x32xf32, #tpu.memory_space<vmem>>, vector<1x32xf32>
    %81 = vector.broadcast %80 : vector<1x32xf32> to vector<8x32xf32>
    %82 = arith.addf %79, %81 : vector<8x32xf32>
    %83 = vector.shape_cast %82 : vector<8x32xf32> to vector<1x8x32xf32>
    %c0_51 = arith.constant 0 : index
    %c0_52 = arith.constant 0 : index
    %c0_53 = arith.constant 0 : index
    %84 = vector.load %arg13[%c0_51, %c0_52, %c0_53] : memref<1x8x32xf32, #tpu.memory_space<vmem>>, vector<1x8x32xf32>
    tpu.vector_store %arg13[%c0_51, %c0_52, %c0_53], %83 {strides = array<i32>} : memref<1x8x32xf32, #tpu.memory_space<vmem>>, vector<1x8x32xf32>,
    return
  }
  func.func @transform_0(%arg0: i32) -> (i32, i32, i32) {
    %c0_i32 = arith.constant 0 : i32
    %c0_i32_0 = arith.constant 0 : i32
    %c0_i32_1 = arith.constant 0 : i32
    return %arg0, %c0_i32, %c0_i32_0 : i32, i32, i32
  }
  func.func @transform_1(%arg0: i32) -> (i32, i32) {
    %c0_i32 = arith.constant 0 : i32
    %c0_i32_0 = arith.constant 0 : i32
    %c0_i32_1 = arith.constant 0 : i32
    return %c0_i32, %c0_i32_0 : i32, i32
  }
  func.func @transform_2(%arg0: i32) -> (i32, i32, i32) {
    %c0_i32 = arith.constant 0 : i32
    %c0_i32_0 = arith.constant 0 : i32
    %c0_i32_1 = arith.constant 0 : i32
    %c0_i32_2 = arith.constant 0 : i32
    return %c0_i32, %c0_i32_0, %c0_i32_1 : i32, i32, i32
  }
  func.func @transform_3(%arg0: i32) -> (i32, i32, i32) {
    %c0_i32 = arith.constant 0 : i32
    %c0_i32_0 = arith.constant 0 : i32
    %c0_i32_1 = arith.constant 0 : i32
    %c0_i32_2 = arith.constant 0 : i32
    return %c0_i32, %c0_i32_0, %c0_i32_1 : i32, i32, i32
  }
  func.func @transform_4(%arg0: i32) -> (i32, i32) {
    %c0_i32 = arith.constant 0 : i32
    %c0_i32_0 = arith.constant 0 : i32
    %c0_i32_1 = arith.constant 0 : i32
    return %c0_i32, %c0_i32_0 : i32, i32
  }
  func.func @transform_5(%arg0: i32) -> (i32, i32) {
    %c0_i32 = arith.constant 0 : i32
    %c0_i32_0 = arith.constant 0 : i32
    %c0_i32_1 = arith.constant 0 : i32
    return %c0_i32, %c0_i32_0 : i32, i32
  }
  func.func @transform_6(%arg0: i32) -> (i32, i32) {
    %c0_i32 = arith.constant 0 : i32
    %c0_i32_0 = arith.constant 0 : i32
    %c0_i32_1 = arith.constant 0 : i32
    return %c0_i32, %c0_i32_0 : i32, i32
  }
  func.func @transform_7(%arg0: i32) -> (i32, i32) {
    %c0_i32 = arith.constant 0 : i32
    %c0_i32_0 = arith.constant 0 : i32
    %c0_i32_1 = arith.constant 0 : i32
    return %c0_i32, %c0_i32_0 : i32, i32
  }
  func.func @transform_8(%arg0: i32) -> (i32, i32) {
    %c0_i32 = arith.constant 0 : i32
    %c0_i32_0 = arith.constant 0 : i32
    %c0_i32_1 = arith.constant 0 : i32
    return %c0_i32, %c0_i32_0 : i32, i32
  }
  func.func @transform_9(%arg0: i32) -> (i32, i32) {
    %c0_i32 = arith.constant 0 : i32
    %c0_i32_0 = arith.constant 0 : i32
    %c0_i32_1 = arith.constant 0 : i32
    return %c0_i32, %c0_i32_0 : i32, i32
  }
  func.func @transform_10(%arg0: i32) -> (i32, i32) {
    %c0_i32 = arith.constant 0 : i32
    %c0_i32_0 = arith.constant 0 : i32
    %c0_i32_1 = arith.constant 0 : i32
    return %c0_i32, %c0_i32_0 : i32, i32
  }
  func.func @transform_11(%arg0: i32) -> (i32, i32) {
    %c0_i32 = arith.constant 0 : i32
    %c0_i32_0 = arith.constant 0 : i32
    %c0_i32_1 = arith.constant 0 : i32
    return %c0_i32, %c0_i32_0 : i32, i32
  }
  func.func @transform_12(%arg0: i32) -> (i32, i32, i32) {
    %c0_i32 = arith.constant 0 : i32
    %c0_i32_0 = arith.constant 0 : i32
    %c0_i32_1 = arith.constant 0 : i32
    return %arg0, %c0_i32, %c0_i32_0 : i32, i32, i32
  }
  func.func @transform_13(%arg0: i32) -> (i32, i32, i32) {
    %c0_i32 = arith.constant 0 : i32
    %c0_i32_0 = arith.constant 0 : i32
    %c0_i32_1 = arith.constant 0 : i32
    %c0_i32_2 = arith.constant 0 : i32
    return %c0_i32, %c0_i32_0, %c0_i32_1 : i32, i32, i32
  }
  func.func @transform_14(%arg0: i32) -> (i32, i32, i32) {
    %c0_i32 = arith.constant 0 : i32
    %c0_i32_0 = arith.constant 0 : i32
    %c0_i32_1 = arith.constant 0 : i32
    %c0_i32_2 = arith.constant 0 : i32
    return %c0_i32, %c0_i32_0, %c0_i32_1 : i32, i32, i32
  }
}

</mosaic_0001>

<llo_original>
// kernel: _decoder_forward.1
$region0: #{_decoder_forward.1}
  #allocation0 [shape = 'u32[]', space=smem, size = 0x4, offset = 0x4, fixed_abs, tag = 'smem constant byte address 0x4 - core index']
  #allocation1 [shape = 'u32[144,128]{1,0:T(1,128)}', space=vmem, size = 0x12000, scoped, tag = 'internal scratch']
  %s0 = inlined_call_operand.vmem [shape: s32[1,8,1], index: 0, kind: input, shape index: {}]
  %s1 = inlined_call_operand.vmem [shape: f32[32,16], index: 1, kind: input, shape index: {}]
  %s2 = inlined_call_operand.hbm [shape: f32[2,8,32], index: 2, kind: input, shape index: {}]
  %s3 = inlined_call_operand.hbm [shape: f32[2,8,32], index: 3, kind: input, shape index: {}]
  %s4 = inlined_call_operand.vmem [shape: f32[16,128], index: 4, kind: input, shape index: {}]
  %s5 = inlined_call_operand.vmem [shape: f32[32,128], index: 5, kind: input, shape index: {}]
  %s6 = inlined_call_operand.vmem [shape: f32[1,128], index: 6, kind: input, shape index: {}]
  %s7 = inlined_call_operand.vmem [shape: f32[32,128], index: 7, kind: input, shape index: {}]
  %s8 = inlined_call_operand.hbm [shape: f32[32,128], index: 8, kind: input, shape index: {}]
  %s9 = inlined_call_operand.vmem [shape: f32[1,128], index: 9, kind: input, shape index: {}]
  %s10 = inlined_call_operand.hbm [shape: f32[32,32], index: 10, kind: input, shape index: {}]
  %s11 = inlined_call_operand.vmem [shape: f32[1,32], index: 11, kind: input, shape index: {}]
  %s12 = inlined_call_operand.hbm [shape: f32[1,8,32], index: 12, kind: output, shape index: {0}]
  %s13 = inlined_call_operand.hbm [shape: f32[2,8,32], index: 13, kind: output, shape index: {1}]
  %s14 = inlined_call_operand.hbm [shape: f32[2,8,32], index: 14, kind: output, shape index: {2}]
  %15 = xla_tuple %s12, %s13, %s14
  %s16 = sld [smem:[#allocation0]]
  $region94: #{_decoder_forward.1} parent=0
    _
  %s18 = ssub.s32 1, %s16
  %s19 = scalar_select 0, %s18, %s16
  $region1: #{_decoder_forward.1} parent=0
    #allocation2 [shape = 'u8[8192]{0}', space=vmem, size = 0x2000, scoped, tag = 'input window, operand 2, single buffered']
    #allocation3 [shape = 's32[1]{0}', space=sflag, size = 0x4, scoped, tag = 'scoped memory for _decoder_forward.1']
    #allocation4 [shape = 's32[1]{0}', space=sflag, size = 0x4, scoped, tag = 'scoped memory for _decoder_forward.1']
    #allocation5 [shape = 'u8[8192]{0}', space=vmem, size = 0x2000, scoped, tag = 'input window, operand 3, single buffered']
    #allocation6 [shape = 's32[1]{0}', space=sflag, size = 0x4, scoped, tag = 'scoped memory for _decoder_forward.1']
    #allocation7 [shape = 'u8[16384]{0}', space=vmem, size = 0x4000, scoped, tag = 'input window, operand 8, single buffered']
    #allocation8 [shape = 'u8[16384]{0}', space=vmem, size = 0x4000, scoped, tag = 'input window, operand 10, single buffered']
    #allocation9 [shape = 's32[1]{0}', space=sflag, size = 0x4, scoped, tag = 'scoped memory for _decoder_forward.1']
    #allocation10 [shape = 'u8[4096]{0}', space=vmem, size = 0x1000, scoped, tag = 'output window, operand 0, single buffered']
    #allocation11 [shape = 'u8[8192]{0}', space=vmem, size = 0x2000, scoped, tag = 'output window, operand 1, single buffered']
    #allocation12 [shape = 's32[1]{0}', space=sflag, size = 0x4, scoped, tag = 'scoped memory for _decoder_forward.1']
    #allocation13 [shape = 'u8[8192]{0}', space=vmem, size = 0x2000, scoped, tag = 'output window, operand 2, single buffered']
    %20 = vsyncpa [#allocation3], 0
    %21 = vsyncpa [#allocation6], 0
    %22 = vsyncpa [#allocation9], 0
    %23 = vsyncpa [#allocation4], 0
    %24 = vsyncpa [#allocation12], 0
    // Predicated region
    $region2: #{_decoder_forward.1} parent=1 // pred_check
      _
    $region3: #{_decoder_forward.1} parent=1 // pred_check_branch
      %26 = sbr.rel (0) target = $region5
    $region4: #{_decoder_forward.1} parent=1 // pred_region
      _
    $region5: #{_decoder_forward.1} parent=1 // pred_fallthru
      _
    // Predicated region
    $region6: #{_decoder_forward.1} parent=1 // pred_check
      _
    $region7: #{_decoder_forward.1} parent=1 // pred_check_branch
      %28 = sbr.rel (0) target = $region9
    $region8: #{_decoder_forward.1} parent=1 // pred_region
      _
    $region9: #{_decoder_forward.1} parent=1 // pred_fallthru
      _
    // Predicated region
    $region10: #{_decoder_forward.1} parent=1 // pred_check
      _
    $region11: #{_decoder_forward.1} parent=1 // pred_check_branch
      %30 = sbr.rel (0) target = $region13
    $region12: #{_decoder_forward.1} parent=1 // pred_region
      %s32 = ssub.s32 256, 256
      %33 = vsyncadd [#allocation3], %s32
      %s34 = sshll.u32 [#allocation2], 4
      %s35 = int_to_ptr.vmem [resolvable:$true] %s34
      %40 = dma.hbm_to_vmem [thread:$0]  %s2, 256, %s35, [#allocation3], 128, 128, 8
    $region13: #{_decoder_forward.1} parent=1 // pred_fallthru
      _
    // Predicated region
    $region14: #{_decoder_forward.1} parent=1 // pred_check
      _
    $region15: #{_decoder_forward.1} parent=1 // pred_check_branch
      %42 = sbr.rel (0) target = $region17
    $region16: #{_decoder_forward.1} parent=1 // pred_region
      %s44 = ssub.s32 256, 256
      %45 = vsyncadd [#allocation6], %s44
      %s46 = sshll.u32 [#allocation5], 4
      %s47 = int_to_ptr.vmem [resolvable:$true] %s46
      %52 = dma.hbm_to_vmem [thread:$0]  %s3, 256, %s47, [#allocation6], 128, 128, 8
    $region17: #{_decoder_forward.1} parent=1 // pred_fallthru
      _
    // Predicated region
    $region18: #{_decoder_forward.1} parent=1 // pred_check
      _
    $region19: #{_decoder_forward.1} parent=1 // pred_check_branch
      %54 = sbr.rel (0) target = $region21
    $region20: #{_decoder_forward.1} parent=1 // pred_region
      _
    $region21: #{_decoder_forward.1} parent=1 // pred_fallthru
      _
    // Predicated region
    $region22: #{_decoder_forward.1} parent=1 // pred_check
      _
    $region23: #{_decoder_forward.1} parent=1 // pred_check_branch
      %56 = sbr.rel (0) target = $region25
    $region24: #{_decoder_forward.1} parent=1 // pred_region
      _
    $region25: #{_decoder_forward.1} parent=1 // pred_fallthru
      _
    // Predicated region
    $region26: #{_decoder_forward.1} parent=1 // pred_check
      _
    $region27: #{_decoder_forward.1} parent=1 // pred_check_branch
      %58 = sbr.rel (0) target = $region29
    $region28: #{_decoder_forward.1} parent=1 // pred_region
      _
    $region29: #{_decoder_forward.1} parent=1 // pred_fallthru
      _
    // Predicated region
    $region30: #{_decoder_forward.1} parent=1 // pred_check
      _
    $region31: #{_decoder_forward.1} parent=1 // pred_check_branch
      %60 = sbr.rel (0) target = $region33
    $region32: #{_decoder_forward.1} parent=1 // pred_region
      _
    $region33: #{_decoder_forward.1} parent=1 // pred_fallthru
      _
    // Predicated region
    $region34: #{_decoder_forward.1} parent=1 // pred_check
      _
    $region35: #{_decoder_forward.1} parent=1 // pred_check_branch
      %62 = sbr.rel (0) target = $region37
    $region36: #{_decoder_forward.1} parent=1 // pred_region
      %s64 = ssub.s32 512, 512
      %65 = vsyncadd [#allocation6], %s64
      %s66 = sshll.u32 [#allocation7], 4
      %s67 = int_to_ptr.vmem [resolvable:$true] %s66
      %72 = dma.hbm_to_vmem [thread:$0]  %s8, 512, %s67, [#allocation6], 128, 128, 8
    $region37: #{_decoder_forward.1} parent=1 // pred_fallthru
      _
    // Predicated region
    $region38: #{_decoder_forward.1} parent=1 // pred_check
      _
    $region39: #{_decoder_forward.1} parent=1 // pred_check_branch
      %74 = sbr.rel (0) target = $region41
    $region40: #{_decoder_forward.1} parent=1 // pred_region
      _
    $region41: #{_decoder_forward.1} parent=1 // pred_fallthru
      _
    // Predicated region
    $region42: #{_decoder_forward.1} parent=1 // pred_check
      _
    $region43: #{_decoder_forward.1} parent=1 // pred_check_branch
      %76 = sbr.rel (0) target = $region45
    $region44: #{_decoder_forward.1} parent=1 // pred_region
      %s78 = ssub.s32 512, 512
      %79 = vsyncadd [#allocation9], %s78
      %s80 = sshll.u32 [#allocation8], 4
      %s81 = int_to_ptr.vmem [resolvable:$true] %s80
      %86 = dma.hbm_to_vmem [thread:$0]  %s10, 512, %s81, [#allocation9], 128, 128, 8
    $region45: #{_decoder_forward.1} parent=1 // pred_fallthru
      _
    // Predicated region
    $region46: #{_decoder_forward.1} parent=1 // pred_check
      _
    $region47: #{_decoder_forward.1} parent=1 // pred_check_branch
      %88 = sbr.rel (0) target = $region49
    $region48: #{_decoder_forward.1} parent=1 // pred_region
      _
    $region49: #{_decoder_forward.1} parent=1 // pred_fallthru
      _
    // Predicated region
    $region50: #{_decoder_forward.1} parent=1 // pred_check
      _
    $region51: #{_decoder_forward.1} parent=1 // pred_check_branch
      %90 = sbr.rel (0) target = $region53
    $region52: #{_decoder_forward.1} parent=1 // pred_region
      %91 = dma.done [#allocation3], 256
    $region53: #{_decoder_forward.1} parent=1 // pred_fallthru
      _
    // Predicated region
    $region54: #{_decoder_forward.1} parent=1 // pred_check
      _
    $region55: #{_decoder_forward.1} parent=1 // pred_check_branch
      %93 = sbr.rel (0) target = $region57
    $region56: #{_decoder_forward.1} parent=1 // pred_region
      %94 = dma.done [#allocation6], 256
    $region57: #{_decoder_forward.1} parent=1 // pred_fallthru
      _
    // Predicated region
    $region58: #{_decoder_forward.1} parent=1 // pred_check
      _
    $region59: #{_decoder_forward.1} parent=1 // pred_check_branch
      %96 = sbr.rel (0) target = $region61
    $region60: #{_decoder_forward.1} parent=1 // pred_region
      %97 = dma.done [#allocation6], 512
    $region61: #{_decoder_forward.1} parent=1 // pred_fallthru
      _
    // Predicated region
    $region62: #{_decoder_forward.1} parent=1 // pred_check
      _
    $region63: #{_decoder_forward.1} parent=1 // pred_check_branch
      %99 = sbr.rel (0) target = $region65
    $region64: #{_decoder_forward.1} parent=1 // pred_region
      %100 = dma.done [#allocation9], 512
    $region65: #{_decoder_forward.1} parent=1 // pred_fallthru
      _
    %p101 = scmp.eq.s32.totalorder 0, 0
    // Predicated region
    $region66: #{_decoder_forward.1} parent=1 // pred_check
      %p102 = pneg %p101
    $region67: #{_decoder_forward.1} parent=1 // pred_check_branch
      %104 = sbr.rel (%p102) target = $region69
    $region68: #{_decoder_forward.1} parent=1 // pred_region
      %v105 = vld [vmem:[#allocation2] sm:$0xff]
      %v106 = vld [vmem:[#allocation2 + $0x8] sm:$0xff]
      %vm107 = vcmask 261120
      %108 = vst.msk [vmem:[#allocation11] sm:$0xff] %vm107, %v105
      %109 = vst.msk [vmem:[#allocation11 + $0x8] sm:$0xff] %vm107, %v106
      %v110 = vld [vmem:[#allocation5] sm:$0xff]
      %v111 = vld [vmem:[#allocation5 + $0x8] sm:$0xff]
      %112 = vst.msk [vmem:[#allocation13] sm:$0xff] %vm107, %v110
      %113 = vst.msk [vmem:[#allocation13 + $0x8] sm:$0xff] %vm107, %v111
    $region69: #{_decoder_forward.1} parent=1 // pred_fallthru
      _
    %v114 = vld [vmem:[%s0] sm:$0xff]
    %v115 = vlaneseq
    %v116 = vand.u32 %v115, 127
    %117 = vset.pattern.permute.xlu0 0
    %118 = vperm.xlu0 %117, %v114
    %v119 = vpop.permute.xlu0 %118
    %vm120 = vcmp.eq.s32.totalorder %v116, %v119
    %v121 = vsel %vm120, 1, 0
    %v122 = vcvt.s32.f32 %v121
    %v123 = vld [vmem:[%s1] sm:$0xff]
    %v124 = vld [vmem:[%s1 + $0x8] sm:$0xff]
    %v125 = vld [vmem:[%s1 + $0x10] sm:$0xff]
    %v126 = vld [vmem:[%s1 + $0x18] sm:$0xff]
    %vm127 = vcmask 261120
    %v129 = vsel %vm127, %v122, 0
    %131 = vmatprep.subr.mxu0 0.0
    %132 = vmatpush1.msra.mxu0 %v123
    %133 = vmatprep.subr.mxu0 0.0
    %134 = vmatpush1.msra.mxu0 %v124
    %135 = vmatprep.subr.mxu0 0.0
    %136 = vmatpush1.msra.mxu0 %v125
    %137 = vmatprep.subr.mxu0 0.0
    %138 = vmatpush1.msra.mxu0 %v126
    %139 = vmatprep.subr.mxu0 0.0
    %140 = vmatpush1.msra.mxu0 0.0
    %141 = vmatprep.subr.mxu0 0.0
    %142 = vmatpush1.msra.mxu0 0.0
    %143 = vmatprep.subr.mxu0 0.0
    %144 = vmatpush1.msra.mxu0 0.0
    %145 = vmatprep.subr.mxu0 0.0
    %146 = vmatpush1.msra.mxu0 0.0
    %147 = vmatprep.subr.mxu0 0.0
    %148 = vmatpush1.msra.mxu0 0.0
    %149 = vmatprep.subr.mxu0 0.0
    %150 = vmatpush1.msra.mxu0 0.0
    %151 = vmatprep.subr.mxu0 0.0
    %152 = vmatpush1.msra.mxu0 0.0
    %153 = vmatprep.subr.mxu0 0.0
    %154 = vmatpush1.msra.mxu0 0.0
    %155 = vmatprep.subr.mxu0 0.0
    %156 = vmatpush1.msra.mxu0 0.0
    %157 = vmatprep.subr.mxu0 0.0
    %158 = vmatpush1.msra.mxu0 0.0
    %159 = vmatprep.subr.mxu0 0.0
    %160 = vmatpush1.msra.mxu0 0.0
    %161 = vmatprep.subr.mxu0 0.0
    %162 = vmatpush1.msra.mxu0 0.0
    %163 = vmatprep.subr.mxu0 0.0
    %164 = vmatpush1.msra.mxu0 0.0
    %165 = vmatprep.subr.mxu0 0.0
    %166 = vmatpush1.msra.mxu0 0.0
    %167 = vmatprep.subr.mxu0 0.0
    %168 = vmatpush1.msra.mxu0 0.0
    %169 = vmatprep.subr.mxu0 0.0
    %170 = vmatpush1.msra.mxu0 0.0
    %171 = vmatprep.subr.mxu0 0.0
    %172 = vmatpush1.msra.mxu0 0.0
    %173 = vmatprep.subr.mxu0 0.0
    %174 = vmatpush1.msra.mxu0 0.0
    %175 = vmatprep.subr.mxu0 0.0
    %176 = vmatpush1.msra.mxu0 0.0
    %177 = vmatprep.subr.mxu0 0.0
    %178 = vmatpush1.msra.mxu0 0.0
    %179 = vmatprep.subr.mxu0 0.0
    %180 = vmatpush1.msra.mxu0 0.0
    %181 = vmatprep.subr.mxu0 0.0
    %182 = vmatpush1.msra.mxu0 0.0
    %183 = vmatprep.subr.mxu0 0.0
    %184 = vmatpush1.msra.mxu0 0.0
    %185 = vmatprep.subr.mxu0 0.0
    %186 = vmatpush1.msra.mxu0 0.0
    %187 = vmatprep.subr.mxu0 0.0
    %188 = vmatpush1.msra.mxu0 0.0
    %189 = vmatprep.subr.mxu0 0.0
    %190 = vmatpush1.msra.mxu0 0.0
    %191 = vmatprep.subr.mxu0 0.0
    %192 = vmatpush1.msra.mxu0 0.0
    %193 = vmatprep.subr.mxu0 0.0
    %194 = vmatpush1.msra.mxu0 0.0
    %195 = vmatprep.mubr.f32.mxu0 0.0
    %196 = vmatmul.mubr.f32.gmra.mrb[0].mxu0 %v129
    %v197 = vpop.f32.mrb[0].mxu0
    %v198 = vadd.f32 0.0, %v197
    %v199 = vpop.f32.mrb[0].mxu0
    %200 = vdwg.mxu0
    %v201 = vld [vmem:[#allocation11] sm:$0xff]
    %v202 = vld [vmem:[#allocation13] sm:$0xff]
    %v203 = vld [vmem:[%s4] sm:$0xff]
    %v204 = vld [vmem:[%s4 + $0x8] sm:$0xff]
    %v205 = vld [vmem:[%s5] sm:$0xff]
    %v206 = vld [vmem:[%s5 + $0x8] sm:$0xff]
    %v207 = vld [vmem:[%s5 + $0x10] sm:$0xff]
    %v208 = vld [vmem:[%s5 + $0x18] sm:$0xff]
    %v210 = vsel %vm127, %v201, 0
    %212 = vmatprep.subr.mxu0 0.0
    %213 = vmatpush1.msra.mxu0 %v205
    %214 = vmatprep.subr.mxu0 0.0
    %215 = vmatpush1.msra.mxu0 %v206
    %216 = vmatprep.subr.mxu0 0.0
    %217 = vmatpush1.msra.mxu0 %v207
    %218 = vmatprep.subr.mxu0 0.0
    %219 = vmatpush1.msra.mxu0 %v208
    %220 = vmatprep.subr.mxu0 0.0
    %221 = vmatpush1.msra.mxu0 0.0
    %222 = vmatprep.subr.mxu0 0.0
    %223 = vmatpush1.msra.mxu0 0.0
    %224 = vmatprep.subr.mxu0 0.0
    %225 = vmatpush1.msra.mxu0 0.0
    %226 = vmatprep.subr.mxu0 0.0
    %227 = vmatpush1.msra.mxu0 0.0
    %228 = vmatprep.subr.mxu0 0.0
    %229 = vmatpush1.msra.mxu0 0.0
    %230 = vmatprep.subr.mxu0 0.0
    %231 = vmatpush1.msra.mxu0 0.0
    %232 = vmatprep.subr.mxu0 0.0
    %233 = vmatpush1.msra.mxu0 0.0
    %234 = vmatprep.subr.mxu0 0.0
    %235 = vmatpush1.msra.mxu0 0.0
    %236 = vmatprep.subr.mxu0 0.0
    %237 = vmatpush1.msra.mxu0 0.0
    %238 = vmatprep.subr.mxu0 0.0
    %239 = vmatpush1.msra.mxu0 0.0
    %240 = vmatprep.subr.mxu0 0.0
    %241 = vmatpush1.msra.mxu0 0.0
    %242 = vmatprep.subr.mxu0 0.0
    %243 = vmatpush1.msra.mxu0 0.0
    %244 = vmatprep.subr.mxu0 0.0
    %245 = vmatpush1.msra.mxu0 0.0
    %246 = vmatprep.subr.mxu0 0.0
    %247 = vmatpush1.msra.mxu0 0.0
    %248 = vmatprep.subr.mxu0 0.0
    %249 = vmatpush1.msra.mxu0 0.0
    %250 = vmatprep.subr.mxu0 0.0
    %251 = vmatpush1.msra.mxu0 0.0
    %252 = vmatprep.subr.mxu0 0.0
    %253 = vmatpush1.msra.mxu0 0.0
    %254 = vmatprep.subr.mxu0 0.0
    %255 = vmatpush1.msra.mxu0 0.0
    %256 = vmatprep.subr.mxu0 0.0
    %257 = vmatpush1.msra.mxu0 0.0
    %258 = vmatprep.subr.mxu0 0.0
    %259 = vmatpush1.msra.mxu0 0.0
    %260 = vmatprep.subr.mxu0 0.0
    %261 = vmatpush1.msra.mxu0 0.0
    %262 = vmatprep.subr.mxu0 0.0
    %263 = vmatpush1.msra.mxu0 0.0
    %264 = vmatprep.subr.mxu0 0.0
    %265 = vmatpush1.msra.mxu0 0.0
    %266 = vmatprep.subr.mxu0 0.0
    %267 = vmatpush1.msra.mxu0 0.0
    %268 = vmatprep.subr.mxu0 0.0
    %269 = vmatpush1.msra.mxu0 0.0
    %270 = vmatprep.subr.mxu0 0.0
    %271 = vmatpush1.msra.mxu0 0.0
    %272 = vmatprep.subr.mxu0 0.0
    %273 = vmatpush1.msra.mxu0 0.0
    %274 = vmatprep.subr.mxu0 0.0
    %275 = vmatpush1.msra.mxu0 0.0
    %276 = vmatprep.mubr.f32.mxu0 0.0
    %277 = vmatmul.mubr.f32.gmra.mrb[0].mxu0 %v210
    %v278 = vpop.f32.mrb[0].mxu0
    %v279 = vadd.f32 0.0, %v278
    %v280 = vpop.f32.mrb[0].mxu0
    %281 = vdwg.mxu0
    %vm282 = vcmask 130048
    %v284 = vsel %vm282, %v198, 0
    %286 = vmatprep.subr.mxu0 0.0
    %287 = vmatpush1.msra.mxu0 %v203
    %288 = vmatprep.subr.mxu0 0.0
    %289 = vmatpush1.msra.mxu0 %v204
    %290 = vmatprep.subr.mxu0 0.0
    %291 = vmatpush1.msra.mxu0 0.0
    %292 = vmatprep.subr.mxu0 0.0
    %293 = vmatpush1.msra.mxu0 0.0
    %294 = vmatprep.subr.mxu0 0.0
    %295 = vmatpush1.msra.mxu0 0.0
    %296 = vmatprep.subr.mxu0 0.0
    %297 = vmatpush1.msra.mxu0 0.0
    %298 = vmatprep.subr.mxu0 0.0
    %299 = vmatpush1.msra.mxu0 0.0
    %300 = vmatprep.subr.mxu0 0.0
    %301 = vmatpush1.msra.mxu0 0.0
    %302 = vmatprep.subr.mxu0 0.0
    %303 = vmatpush1.msra.mxu0 0.0
    %304 = vmatprep.subr.mxu0 0.0
    %305 = vmatpush1.msra.mxu0 0.0
    %306 = vmatprep.subr.mxu0 0.0
    %307 = vmatpush1.msra.mxu0 0.0
    %308 = vmatprep.subr.mxu0 0.0
    %309 = vmatpush1.msra.mxu0 0.0
    %310 = vmatprep.subr.mxu0 0.0
    %311 = vmatpush1.msra.mxu0 0.0
    %312 = vmatprep.subr.mxu0 0.0
    %313 = vmatpush1.msra.mxu0 0.0
    %314 = vmatprep.subr.mxu0 0.0
    %315 = vmatpush1.msra.mxu0 0.0
    %316 = vmatprep.subr.mxu0 0.0
    %317 = vmatpush1.msra.mxu0 0.0
    %318 = vmatprep.subr.mxu0 0.0
    %319 = vmatpush1.msra.mxu0 0.0
    %320 = vmatprep.subr.mxu0 0.0
    %321 = vmatpush1.msra.mxu0 0.0
    %322 = vmatprep.subr.mxu0 0.0
    %323 = vmatpush1.msra.mxu0 0.0
    %324 = vmatprep.subr.mxu0 0.0
    %325 = vmatpush1.msra.mxu0 0.0
    %326 = vmatprep.subr.mxu0 0.0
    %327 = vmatpush1.msra.mxu0 0.0
    %328 = vmatprep.subr.mxu0 0.0
    %329 = vmatpush1.msra.mxu0 0.0
    %330 = vmatprep.subr.mxu0 0.0
    %331 = vmatpush1.msra.mxu0 0.0
    %332 = vmatprep.subr.mxu0 0.0
    %333 = vmatpush1.msra.mxu0 0.0
    %334 = vmatprep.subr.mxu0 0.0
    %335 = vmatpush1.msra.mxu0 0.0
    %336 = vmatprep.subr.mxu0 0.0
    %337 = vmatpush1.msra.mxu0 0.0
    %338 = vmatprep.subr.mxu0 0.0
    %339 = vmatpush1.msra.mxu0 0.0
    %340 = vmatprep.subr.mxu0 0.0
    %341 = vmatpush1.msra.mxu0 0.0
    %342 = vmatprep.subr.mxu0 0.0
    %343 = vmatpush1.msra.mxu0 0.0
    %344 = vmatprep.subr.mxu0 0.0
    %345 = vmatpush1.msra.mxu0 0.0
    %346 = vmatprep.subr.mxu0 0.0
    %347 = vmatpush1.msra.mxu0 0.0
    %348 = vmatprep.subr.mxu0 0.0
    %349 = vmatpush1.msra.mxu0 0.0
    %350 = vmatprep.mubr.f32.mxu0 0.0
    %351 = vmatmul.mubr.f32.gmra.mrb[0].mxu0 %v284
    %v352 = vpop.f32.mrb[0].mxu0
    %v353 = vadd.f32 %v279, %v352
    %v354 = vpop.f32.mrb[0].mxu0
    %355 = vdwg.mxu0
    %v356 = vld [vmem:[%s6] sm:$0x1]
    %v358 = vlaneseq
    %v359 = vshrl.u32 %v358, 7
    %v360 = vsub.s32 0, %v359
    %v361 = vrot.slane %v356, %v360
    %v363 = vadd.f32 %v353, %v361
    %v364 = vxor.u32 %v363, 2147483648
    %v365 = vmul.f32 %v364, 1.442695
    %v366 = vpow.pop %v365
    %v367 = vadd.f32 %v366, 1.0
    %v368 = vrcp.pop %v367
    %v369 = vmul.f32 1.0, %v368
    %v370 = vtanh.pop %v363
    %372 = vrot.lane.b32.xlu0 %v202, 32
    %v373 = vpop.permute.xlu0 %372
    %v375 = vmul.f32 %v369, %v373
    %377 = vrot.lane.b32.xlu0 %v370, 64
    %v378 = vpop.permute.xlu0 %377
    %v380 = vmul.f32 %v369, %v378
    %382 = vrot.lane.b32.xlu0 %v380, 32
    %v383 = vpop.permute.xlu0 %382
    %v385 = vadd.f32 %v375, %v383
    %v386 = vtanh.pop %v385
    %388 = vrot.lane.b32.xlu0 %v386, 64
    %v389 = vpop.permute.xlu0 %388
    %v391 = vmul.f32 %v369, %v389
    %393 = vrot.lane.b32.xlu0 %v391, 32
    %v394 = vpop.permute.xlu0 %393
    %396 = vst.msk [vmem:[#allocation11] sm:$0xff] %vm127, %v394
    %398 = vrot.lane.b32.xlu0 %v385, 96
    %v399 = vpop.permute.xlu0 %398
    %401 = vst.msk [vmem:[#allocation13] sm:$0xff] %vm127, %v399
    %s402 = scalar_lea.vmem [#allocation11], 8
    %v403 = vld [vmem:[%s402] sm:$0xff]
    %s404 = scalar_lea.vmem [#allocation13], 8
    %v405 = vld [vmem:[%s404] sm:$0xff]
    %v406 = vld [vmem:[%s7] sm:$0xff]
    %v407 = vld [vmem:[%s7 + $0x8] sm:$0xff]
    %v408 = vld [vmem:[%s7 + $0x10] sm:$0xff]
    %v409 = vld [vmem:[%s7 + $0x18] sm:$0xff]
    %v410 = vld [vmem:[#allocation7] sm:$0xff]
    %v411 = vld [vmem:[#allocation7 + $0x8] sm:$0xff]
    %v412 = vld [vmem:[#allocation7 + $0x10] sm:$0xff]
    %v413 = vld [vmem:[#allocation7 + $0x18] sm:$0xff]
    %v415 = vsel %vm127, %v403, 0
    %417 = vmatprep.subr.mxu0 0.0
    %418 = vmatpush1.msra.mxu0 %v410
    %419 = vmatprep.subr.mxu0 0.0
    %420 = vmatpush1.msra.mxu0 %v411
    %421 = vmatprep.subr.mxu0 0.0
    %422 = vmatpush1.msra.mxu0 %v412
    %423 = vmatprep.subr.mxu0 0.0
    %424 = vmatpush1.msra.mxu0 %v413
    %425 = vmatprep.subr.mxu0 0.0
    %426 = vmatpush1.msra.mxu0 0.0
    %427 = vmatprep.subr.mxu0 0.0
    %428 = vmatpush1.msra.mxu0 0.0
    %429 = vmatprep.subr.mxu0 0.0
    %430 = vmatpush1.msra.mxu0 0.0
    %431 = vmatprep.subr.mxu0 0.0
    %432 = vmatpush1.msra.mxu0 0.0
    %433 = vmatprep.subr.mxu0 0.0
    %434 = vmatpush1.msra.mxu0 0.0
    %435 = vmatprep.subr.mxu0 0.0
    %436 = vmatpush1.msra.mxu0 0.0
    %437 = vmatprep.subr.mxu0 0.0
    %438 = vmatpush1.msra.mxu0 0.0
    %439 = vmatprep.subr.mxu0 0.0
    %440 = vmatpush1.msra.mxu0 0.0
    %441 = vmatprep.subr.mxu0 0.0
    %442 = vmatpush1.msra.mxu0 0.0
    %443 = vmatprep.subr.mxu0 0.0
    %444 = vmatpush1.msra.mxu0 0.0
    %445 = vmatprep.subr.mxu0 0.0
    %446 = vmatpush1.msra.mxu0 0.0
    %447 = vmatprep.subr.mxu0 0.0
    %448 = vmatpush1.msra.mxu0 0.0
    %449 = vmatprep.subr.mxu0 0.0
    %450 = vmatpush1.msra.mxu0 0.0
    %451 = vmatprep.subr.mxu0 0.0
    %452 = vmatpush1.msra.mxu0 0.0
    %453 = vmatprep.subr.mxu0 0.0
    %454 = vmatpush1.msra.mxu0 0.0
    %455 = vmatprep.subr.mxu0 0.0
    %456 = vmatpush1.msra.mxu0 0.0
    %457 = vmatprep.subr.mxu0 0.0
    %458 = vmatpush1.msra.mxu0 0.0
    %459 = vmatprep.subr.mxu0 0.0
    %460 = vmatpush1.msra.mxu0 0.0
    %461 = vmatprep.subr.mxu0 0.0
    %462 = vmatpush1.msra.mxu0 0.0
    %463 = vmatprep.subr.mxu0 0.0
    %464 = vmatpush1.msra.mxu0 0.0
    %465 = vmatprep.subr.mxu0 0.0
    %466 = vmatpush1.msra.mxu0 0.0
    %467 = vmatprep.subr.mxu0 0.0
    %468 = vmatpush1.msra.mxu0 0.0
    %469 = vmatprep.subr.mxu0 0.0
    %470 = vmatpush1.msra.mxu0 0.0
    %471 = vmatprep.subr.mxu0 0.0
    %472 = vmatpush1.msra.mxu0 0.0
    %473 = vmatprep.subr.mxu0 0.0
    %474 = vmatpush1.msra.mxu0 0.0
    %475 = vmatprep.subr.mxu0 0.0
    %476 = vmatpush1.msra.mxu0 0.0
    %477 = vmatprep.subr.mxu0 0.0
    %478 = vmatpush1.msra.mxu0 0.0
    %479 = vmatprep.subr.mxu0 0.0
    %480 = vmatpush1.msra.mxu0 0.0
    %481 = vmatprep.mubr.f32.mxu0 0.0
    %482 = vmatmul.mubr.f32.gmra.mrb[0].mxu0 %v415
    %v483 = vpop.f32.mrb[0].mxu0
    %v484 = vadd.f32 0.0, %v483
    %v485 = vpop.f32.mrb[0].mxu0
    %486 = vdwg.mxu0
    %v487 = vsel %vm127, %v394, 0
    %489 = vmatprep.subr.mxu0 0.0
    %490 = vmatpush1.msra.mxu0 %v406
    %491 = vmatprep.subr.mxu0 0.0
    %492 = vmatpush1.msra.mxu0 %v407
    %493 = vmatprep.subr.mxu0 0.0
    %494 = vmatpush1.msra.mxu0 %v408
    %495 = vmatprep.subr.mxu0 0.0
    %496 = vmatpush1.msra.mxu0 %v409
    %497 = vmatprep.subr.mxu0 0.0
    %498 = vmatpush1.msra.mxu0 0.0
    %499 = vmatprep.subr.mxu0 0.0
    %500 = vmatpush1.msra.mxu0 0.0
    %501 = vmatprep.subr.mxu0 0.0
    %502 = vmatpush1.msra.mxu0 0.0
    %503 = vmatprep.subr.mxu0 0.0
    %504 = vmatpush1.msra.mxu0 0.0
    %505 = vmatprep.subr.mxu0 0.0
    %506 = vmatpush1.msra.mxu0 0.0
    %507 = vmatprep.subr.mxu0 0.0
    %508 = vmatpush1.msra.mxu0 0.0
    %509 = vmatprep.subr.mxu0 0.0
    %510 = vmatpush1.msra.mxu0 0.0
    %511 = vmatprep.subr.mxu0 0.0
    %512 = vmatpush1.msra.mxu0 0.0
    %513 = vmatprep.subr.mxu0 0.0
    %514 = vmatpush1.msra.mxu0 0.0
    %515 = vmatprep.subr.mxu0 0.0
    %516 = vmatpush1.msra.mxu0 0.0
    %517 = vmatprep.subr.mxu0 0.0
    %518 = vmatpush1.msra.mxu0 0.0
    %519 = vmatprep.subr.mxu0 0.0
    %520 = vmatpush1.msra.mxu0 0.0
    %521 = vmatprep.subr.mxu0 0.0
    %522 = vmatpush1.msra.mxu0 0.0
    %523 = vmatprep.subr.mxu0 0.0
    %524 = vmatpush1.msra.mxu0 0.0
    %525 = vmatprep.subr.mxu0 0.0
    %526 = vmatpush1.msra.mxu0 0.0
    %527 = vmatprep.subr.mxu0 0.0
    %528 = vmatpush1.msra.mxu0 0.0
    %529 = vmatprep.subr.mxu0 0.0
    %530 = vmatpush1.msra.mxu0 0.0
    %531 = vmatprep.subr.mxu0 0.0
    %532 = vmatpush1.msra.mxu0 0.0
    %533 = vmatprep.subr.mxu0 0.0
    %534 = vmatpush1.msra.mxu0 0.0
    %535 = vmatprep.subr.mxu0 0.0
    %536 = vmatpush1.msra.mxu0 0.0
    %537 = vmatprep.subr.mxu0 0.0
    %538 = vmatpush1.msra.mxu0 0.0
    %539 = vmatprep.subr.mxu0 0.0
    %540 = vmatpush1.msra.mxu0 0.0
    %541 = vmatprep.subr.mxu0 0.0
    %542 = vmatpush1.msra.mxu0 0.0
    %543 = vmatprep.subr.mxu0 0.0
    %544 = vmatpush1.msra.mxu0 0.0
    %545 = vmatprep.subr.mxu0 0.0
    %546 = vmatpush1.msra.mxu0 0.0
    %547 = vmatprep.subr.mxu0 0.0
    %548 = vmatpush1.msra.mxu0 0.0
    %549 = vmatprep.subr.mxu0 0.0
    %550 = vmatpush1.msra.mxu0 0.0
    %551 = vmatprep.subr.mxu0 0.0
    %552 = vmatpush1.msra.mxu0 0.0
    %553 = vmatprep.mubr.f32.mxu0 0.0
    %554 = vmatmul.mubr.f32.gmra.mrb[0].mxu0 %v487
    %v555 = vpop.f32.mrb[0].mxu0
    %v556 = vadd.f32 %v484, %v555
    %v557 = vpop.f32.mrb[0].mxu0
    %558 = vdwg.mxu0
    %v559 = vld [vmem:[%s9] sm:$0x1]
    %v561 = vlaneseq
    %v562 = vshrl.u32 %v561, 7
    %v563 = vsub.s32 0, %v562
    %v564 = vrot.slane %v559, %v563
    %v566 = vadd.f32 %v556, %v564
    %v567 = vxor.u32 %v566, 2147483648
    %v568 = vmul.f32 %v567, 1.442695
    %v569 = vpow.pop %v568
    %v570 = vadd.f32 %v569, 1.0
    %v571 = vrcp.pop %v570
    %v572 = vmul.f32 1.0, %v571
    %v573 = vtanh.pop %v566
    %575 = vrot.lane.b32.xlu0 %v405, 32
    %v576 = vpop.permute.xlu0 %575
    %v578 = vmul.f32 %v572, %v576
    %580 = vrot.lane.b32.xlu0 %v573, 64
    %v581 = vpop.permute.xlu0 %580
    %v583 = vmul.f32 %v572, %v581
    %585 = vrot.lane.b32.xlu0 %v583, 32
    %v586 = vpop.permute.xlu0 %585
    %v588 = vadd.f32 %v578, %v586
    %v589 = vtanh.pop %v588
    %591 = vrot.lane.b32.xlu0 %v589, 64
    %v592 = vpop.permute.xlu0 %591
    %v594 = vmul.f32 %v572, %v592
    %596 = vrot.lane.b32.xlu0 %v594, 32
    %v597 = vpop.permute.xlu0 %596
    %599 = vst.msk [vmem:[%s402] sm:$0xff] %vm127, %v597
    %601 = vrot.lane.b32.xlu0 %v588, 96
    %v602 = vpop.permute.xlu0 %601
    %604 = vst.msk [vmem:[%s404] sm:$0xff] %vm127, %v602
    %v605 = vld [vmem:[#allocation8] sm:$0xff]
    %v606 = vld [vmem:[#allocation8 + $0x8] sm:$0xff]
    %v607 = vld [vmem:[#allocation8 + $0x10] sm:$0xff]
    %v608 = vld [vmem:[#allocation8 + $0x18] sm:$0xff]
    %v609 = vld [vmem:[%s11] sm:$0x1]
    %v611 = vlaneseq
    %v612 = vshrl.u32 %v611, 7
    %v613 = vsub.s32 0, %v612
    %v614 = vrot.slane %v609, %v613
    %v616 = vsel %vm127, %v597, 0
    %618 = vmatprep.subr.mxu0 0.0
    %619 = vmatpush1.msra.mxu0 %v605
    %620 = vmatprep.subr.mxu0 0.0
    %621 = vmatpush1.msra.mxu0 %v606
    %622 = vmatprep.subr.mxu0 0.0
    %623 = vmatpush1.msra.mxu0 %v607
    %624 = vmatprep.subr.mxu0 0.0
    %625 = vmatpush1.msra.mxu0 %v608
    %626 = vmatprep.subr.mxu0 0.0
    %627 = vmatpush1.msra.mxu0 0.0
    %628 = vmatprep.subr.mxu0 0.0
    %629 = vmatpush1.msra.mxu0 0.0
    %630 = vmatprep.subr.mxu0 0.0
    %631 = vmatpush1.msra.mxu0 0.0
    %632 = vmatprep.subr.mxu0 0.0
    %633 = vmatpush1.msra.mxu0 0.0
    %634 = vmatprep.subr.mxu0 0.0
    %635 = vmatpush1.msra.mxu0 0.0
    %636 = vmatprep.subr.mxu0 0.0
    %637 = vmatpush1.msra.mxu0 0.0
    %638 = vmatprep.subr.mxu0 0.0
    %639 = vmatpush1.msra.mxu0 0.0
    %640 = vmatprep.subr.mxu0 0.0
    %641 = vmatpush1.msra.mxu0 0.0
    %642 = vmatprep.subr.mxu0 0.0
    %643 = vmatpush1.msra.mxu0 0.0
    %644 = vmatprep.subr.mxu0 0.0
    %645 = vmatpush1.msra.mxu0 0.0
    %646 = vmatprep.subr.mxu0 0.0
    %647 = vmatpush1.msra.mxu0 0.0
    %648 = vmatprep.subr.mxu0 0.0
    %649 = vmatpush1.msra.mxu0 0.0
    %650 = vmatprep.subr.mxu0 0.0
    %651 = vmatpush1.msra.mxu0 0.0
    %652 = vmatprep.subr.mxu0 0.0
    %653 = vmatpush1.msra.mxu0 0.0
    %654 = vmatprep.subr.mxu0 0.0
    %655 = vmatpush1.msra.mxu0 0.0
    %656 = vmatprep.subr.mxu0 0.0
    %657 = vmatpush1.msra.mxu0 0.0
    %658 = vmatprep.subr.mxu0 0.0
    %659 = vmatpush1.msra.mxu0 0.0
    %660 = vmatprep.subr.mxu0 0.0
    %661 = vmatpush1.msra.mxu0 0.0
    %662 = vmatprep.subr.mxu0 0.0
    %663 = vmatpush1.msra.mxu0 0.0
    %664 = vmatprep.subr.mxu0 0.0
    %665 = vmatpush1.msra.mxu0 0.0
    %666 = vmatprep.subr.mxu0 0.0
    %667 = vmatpush1.msra.mxu0 0.0
    %668 = vmatprep.subr.mxu0 0.0
    %669 = vmatpush1.msra.mxu0 0.0
    %670 = vmatprep.subr.mxu0 0.0
    %671 = vmatpush1.msra.mxu0 0.0
    %672 = vmatprep.subr.mxu0 0.0
    %673 = vmatpush1.msra.mxu0 0.0
    %674 = vmatprep.subr.mxu0 0.0
    %675 = vmatpush1.msra.mxu0 0.0
    %676 = vmatprep.subr.mxu0 0.0
    %677 = vmatpush1.msra.mxu0 0.0
    %678 = vmatprep.subr.mxu0 0.0
    %679 = vmatpush1.msra.mxu0 0.0
    %680 = vmatprep.subr.mxu0 0.0
    %681 = vmatpush1.msra.mxu0 0.0
    %682 = vmatprep.mubr.f32.mxu0 0.0
    %683 = vmatmul.mubr.f32.gmra.mrb[0].mxu0 %v616
    %v684 = vpop.f32.mrb[0].mxu0
    %v685 = vadd.f32 %v614, %v684
    %v686 = vpop.f32.mrb[0].mxu0
    %687 = vdwg.mxu0
    %688 = vst.msk [vmem:[#allocation10] sm:$0xff] %vm127, %v685
    // Predicated region
    $region70: #{_decoder_forward.1} parent=1 // pred_check
      _
    $region71: #{_decoder_forward.1} parent=1 // pred_check_branch
      %690 = sbr.rel (0) target = $region73
    $region72: #{_decoder_forward.1} parent=1 // pred_region
      %s692 = ssub.s32 128, 128
      %693 = vsyncadd [#allocation4], %s692
      %s695 = sshll.u32 [#allocation10], 4
      %s696 = int_to_ptr.vmem [resolvable:$true] %s695
      %698 = dma.vmem_to_hbm [thread:$0]  %s696, 128, %s12, [#allocation4]
    $region73: #{_decoder_forward.1} parent=1 // pred_fallthru
      _
    // Predicated region
    $region74: #{_decoder_forward.1} parent=1 // pred_check
      _
    $region75: #{_decoder_forward.1} parent=1 // pred_check_branch
      %700 = sbr.rel (0) target = $region77
    $region76: #{_decoder_forward.1} parent=1 // pred_region
      %s702 = ssub.s32 256, 256
      %703 = vsyncadd [#allocation12], %s702
      %s704 = sshll.u32 [#allocation11], 4
      %s705 = int_to_ptr.vmem [resolvable:$true] %s704
      %710 = dma.vmem_to_hbm [thread:$0]  %s705, 256, %s13, [#allocation12], 128, 128, 8
    $region77: #{_decoder_forward.1} parent=1 // pred_fallthru
      _
    // Predicated region
    $region78: #{_decoder_forward.1} parent=1 // pred_check
      _
    $region79: #{_decoder_forward.1} parent=1 // pred_check_branch
      %712 = sbr.rel (0) target = $region81
    $region80: #{_decoder_forward.1} parent=1 // pred_region
      %s714 = ssub.s32 256, 256
      %715 = vsyncadd [#allocation12], %s714
      %s716 = sshll.u32 [#allocation13], 4
      %s717 = int_to_ptr.vmem [resolvable:$true] %s716
      %722 = dma.vmem_to_hbm [thread:$0]  %s717, 256, %s14, [#allocation12], 128, 128, 8
    $region81: #{_decoder_forward.1} parent=1 // pred_fallthru
      _
    // Predicated region
    $region82: #{_decoder_forward.1} parent=1 // pred_check
      _
    $region83: #{_decoder_forward.1} parent=1 // pred_check_branch
      %724 = sbr.rel (0) target = $region85
    $region84: #{_decoder_forward.1} parent=1 // pred_region
      %725 = dma.done [#allocation4], 128
    $region85: #{_decoder_forward.1} parent=1 // pred_fallthru
      _
    // Predicated region
    $region86: #{_decoder_forward.1} parent=1 // pred_check
      _
    $region87: #{_decoder_forward.1} parent=1 // pred_check_branch
      %727 = sbr.rel (0) target = $region89
    $region88: #{_decoder_forward.1} parent=1 // pred_region
      %728 = dma.done [#allocation12], 256
    $region89: #{_decoder_forward.1} parent=1 // pred_fallthru
      _
    // Predicated region
    $region90: #{_decoder_forward.1} parent=1 // pred_check
      _
    $region91: #{_decoder_forward.1} parent=1 // pred_check_branch
      %730 = sbr.rel (0) target = $region93
    $region92: #{_decoder_forward.1} parent=1 // pred_region
      %731 = dma.done [#allocation12], 256
    $region93: #{_decoder_forward.1} parent=1 // pred_fallthru
      _
    %732 = vsyncpa [#allocation3], 1
    %733 = vsyncpa [#allocation6], 1
    %734 = vsyncpa [#allocation9], 1
    %735 = vsyncpa [#allocation4], 1
    %736 = vsyncpa [#allocation12], 1

</llo_original>
